<compile_context>
chip_gen: v7x
topology: tpu7x:2x2x1
jax: 0.10.0
libtpu: 0.0.40
codegen_flags: <defaults>
</compile_context>

<pallas_src>
import functools

import jax
import jax.numpy as jnp
from jax import lax
from jax.experimental import pallas as pl
from jax.experimental.pallas import tpu as pltpu


def _vq_kernel(z_ref, e_ref, e2_ref, zq_ref, sse_ref, *, n_valid_rows, tm):
    i = pl.program_id(0)

    z = z_ref[...].astype(jnp.float32)        # (tm, Dp)   zero-padded columns/rows
    e = e_ref[...].astype(jnp.float32)        # (Kp, Dp)   zero-padded codewords
    e2 = e2_ref[...].astype(jnp.float32)      # (1, Kp)    +big for padded codewords
    kp = e.shape[0]

    # Distance up to a per-row constant (||z||^2 dropped — argmin-invariant).
    # Contract dim 1 of z against dim 1 of e: no explicit transpose of the codebook.
    dot = lax.dot_general(
        z, e,
        dimension_numbers=(((1,), (1,)), ((), ())),
        preferred_element_type=jnp.float32)   # (tm, Kp)  — MXU
    dist = e2 - 2.0 * dot

    # argmin along codebook axis (first index on ties, matching torch.argmin)
    col = lax.broadcasted_iota(jnp.int32, dist.shape, 1)            # (tm, Kp)
    min_d = jnp.min(dist, axis=1, keepdims=True)                    # (tm, 1)
    idx = jnp.min(jnp.where(dist == min_d, col, kp), axis=1, keepdims=True)

    # Embedding lookup via one-hot matmul (exact 0/1 weights -> exact codebook rows).
    one_hot = (col == idx).astype(jnp.float32)                      # (tm, Kp)
    zq = jnp.dot(one_hot, e, preferred_element_type=jnp.float32)    # (tm, Dp) — MXU
    zq_ref[...] = zq.astype(zq_ref.dtype)

    # Per-program SSE partial, masked for padded rows, kept lane-resident (1, Dp):
    # single sublane reduce per step, lane-dense store; final scalar reduce in wrapper.
    row = lax.broadcasted_iota(jnp.int32, (tm, 1), 0) + i * tm
    valid = (row < n_valid_rows).astype(jnp.float32)                # (tm, 1)
    diff = (zq - z) * valid
    part = jnp.sum(diff * diff, axis=0, keepdims=True)              # (1, Dp)
    sse_ref[...] = part.reshape(sse_ref.shape)


def vector_quantizer(z, embedding_weight, beta=0.25, tm=256):
    """Forward pass of VectorQuantizer. Returns (z_quantized, quantization_loss)."""
    D = z.shape[-1]
    K = embedding_weight.shape[0]
    z_flat = z.reshape(-1, D).astype(jnp.float32)
    M = z_flat.shape[0]

    # Lane-dense padding: last dims to multiples of 128, row tile to a multiple of 8.
    Dp = pl.cdiv(D, 128) * 128
    Kp = pl.cdiv(K, 128) * 128
    tm = max(8, min(tm, pl.cdiv(M, 8) * 8))
    Mp = pl.cdiv(M, tm) * tm
    grid = Mp // tm

    # Zero-pad z (rows + columns) and the codebook (rows + columns).  Zero columns do not
    # change dot products or SSE; padded codewords are excluded via a huge ||e||^2.
    z_pad = jnp.zeros((Mp, Dp), jnp.float32).at[:M, :D].set(z_flat)
    e_pad = jnp.zeros((Kp, Dp), jnp.float32).at[:K, :D].set(
        embedding_weight.astype(jnp.float32))

    # Hoisted, grid-invariant ||e||^2 (computed once, outside the kernel).
    e2 = jnp.sum(e_pad * e_pad, axis=1)
    e2_pad = jnp.where(jnp.arange(Kp) < K, e2, jnp.float32(1e30)).reshape(1, Kp)

    kernel = functools.partial(_vq_kernel, n_valid_rows=M, tm=tm)

    flops = 2 * 2 * Mp * Kp * Dp                       # two matmuls per row tile
    bytes_accessed = 4 * (2 * Mp * Dp + Kp * Dp + Kp + grid * Dp)

    zq_pad, sse_parts = pl.pallas_call(
        kernel,
        out_shape=(
            jax.ShapeDtypeStruct((Mp, Dp), jnp.float32),
            jax.ShapeDtypeStruct((grid, 1, Dp), jnp.float32),
        ),
        grid_spec=pltpu.PrefetchScalarGridSpec(
            num_scalar_prefetch=0,
            grid=(grid,),
            in_specs=[
                pl.BlockSpec((tm, Dp), lambda i: (i, 0)),      # row tile of flattened z
                # Grid-invariant codebook.  (For large K*D on v7x, consider
                # pipeline_mode=pl.Buffered(1) / a persistent VMEM scratch to avoid
                # double-buffering an invariant block.)
                pl.BlockSpec((Kp, Dp), lambda i: (0, 0)),
                pl.BlockSpec((1, Kp), lambda i: (0, 0)),       # hoisted ||e||^2
            ],
            out_specs=[
                pl.BlockSpec((tm, Dp), lambda i: (i, 0)),      # quantized tile (lane-dense)
                pl.BlockSpec((1, 1, Dp), lambda i: (i, 0, 0)),  # per-program SSE partial
            ],
        ),
        compiler_params=pltpu.CompilerParams(
            # No cross-step dependency left -> row axis can shard across TensorCores.
            dimension_semantics=("parallel",),
            vmem_limit_bytes=32 * 1024 * 1024,
        ),
        cost_estimate=pl.CostEstimate(
            flops=flops, transcendentals=0, bytes_accessed=bytes_accessed),
    )(z_pad, e_pad, e2_pad)

    sse = jnp.sum(sse_parts)                 # padded rows/cols contribute exactly 0
    mse = sse / (M * D)
    # mse(z_q.detach(), z) + beta * mse(z_q, z.detach()) -> (1 + beta) * mse (forward value)
    quantization_loss = (1.0 + beta) * mse
    # straight-through estimator: forward value equals z_q
    z_quantized = zq_pad[:M, :D].reshape(z.shape).astype(z.dtype)
    return z_quantized, quantization_loss


def _reference(z, embedding_weight, beta=0.25):
    """Pure-JAX reference mirroring the PyTorch forward."""
    D = z.shape[-1]
    zf = z.reshape(-1, D)
    d = (jnp.sum(zf**2, axis=1, keepdims=True)
         + jnp.sum(embedding_weight**2, axis=1)
         - 2.0 * zf @ embedding_weight.T)
    idx = jnp.argmin(d, axis=1)
    zq = embedding_weight[idx].reshape(z.shape)
    loss = jnp.mean((zq - z) ** 2) + beta * jnp.mean((zq - z) ** 2)
    return zq, loss


if __name__ == "__main__":
    num_embeddings = 16
    embedding_dim = 32
    beta = 0.25

    key = jax.random.PRNGKey(0)
    k_emb, k_z = jax.random.split(key)

    # nn.Embedding weight, uniform_(-1/num_embeddings, 1/num_embeddings)
    embedding_weight = jax.random.uniform(
        k_emb, (num_embeddings, embedding_dim),
        minval=-1.0 / num_embeddings, maxval=1.0 / num_embeddings,
        dtype=jnp.float32)

    # z: (B, N, D) with D == embedding_dim (channels-last, = PyTorch's z.view(-1, D))
    z = jax.random.normal(k_z, (2, 64, embedding_dim), dtype=jnp.float32)

    zq, loss = vector_quantizer(z, embedding_weight, beta=beta)
    jax.block_until_ready((zq, loss))

    zq_ref, loss_ref = _reference(z, embedding_weight, beta=beta)
    assert jnp.allclose(zq, zq_ref, atol=1e-5, rtol=1e-5), "z_quantized mismatch"
    assert jnp.allclose(loss, loss_ref, atol=1e-5, rtol=1e-5), "loss mismatch"

    print("KERNEL_OK")
</pallas_src>

<mosaic_0001>
module attributes {stable_mosaic.version = 11 : i64} {
  func.func @_vq_kernel(%arg0: i32, %arg1: memref<128x128xf32, #tpu.memory_space<vmem>>, %arg2: memref<128x128xf32, #tpu.memory_space<vmem>>, %arg3: memref<1x128xf32, #tpu.memory_space<vmem>>, %arg4: memref<128x128xf32, #tpu.memory_space<vmem>>, %arg5: memref<1x1x128xf32, #tpu.memory_space<vmem>>) attributes {dimension_semantics = [#tpu.dimension_semantics<parallel>], iteration_bounds = array<i64: 1>, scalar_prefetch = 0 : i64, scratch_operands = 0 : i64, tpu.core_type = #tpu.core_type<tc>, window_params = [{transform_indices = @transform_0, window_bounds = array<i64: 128, 128>}, {pipeline_mode = #tpu.pipeline_mode<synchronous>, transform_indices = @transform_1, window_bounds = array<i64: 128, 128>}, {pipeline_mode = #tpu.pipeline_mode<synchronous>, transform_indices = @transform_2, window_bounds = array<i64: 1, 128>}, {transform_indices = @transform_3, window_bounds = array<i64: 128, 128>}, {transform_indices = @transform_4, window_bounds = array<i64: 1, 1, 128>}]} {
    %c0 = arith.constant 0 : index
    %c0_0 = arith.constant 0 : index
    %0 = vector.load %arg1[%c0, %c0_0] : memref<128x128xf32, #tpu.memory_space<vmem>>, vector<128x128xf32>
    %c0_1 = arith.constant 0 : index
    %c0_2 = arith.constant 0 : index
    %1 = vector.load %arg2[%c0_1, %c0_2] : memref<128x128xf32, #tpu.memory_space<vmem>>, vector<128x128xf32>
    %c0_3 = arith.constant 0 : index
    %c0_4 = arith.constant 0 : index
    %2 = vector.load %arg3[%c0_3, %c0_4] : memref<1x128xf32, #tpu.memory_space<vmem>>, vector<1x128xf32>
    %cst = arith.constant dense<0.000000e+00> : vector<128x128xf32>
    %3 = tpu.matmul %0, %1, %cst {dimension_numbers = #tpu.dot_dimension_numbers<[1], [1], [0], [0], [0, 0, 1, 0], [], []>} : vector<128x128xf32>, vector<128x128xf32>, vector<128x128xf32> -> vector<128x128xf32>
    %cst_5 = arith.constant 2.000000e+00 : f32
    %4 = vector.broadcast %cst_5 : f32 to vector<128x128xf32>
    %5 = arith.mulf %4, %3 : vector<128x128xf32>
    %6 = vector.broadcast %2 : vector<1x128xf32> to vector<128x128xf32>
    %7 = arith.subf %6, %5 : vector<128x128xf32>
    %8 = tpu.iota {dimensions = array<i32: 1>} : vector<128x128xi32>
    %cst_6 = arith.constant dense<0x7F800000> : vector<128xf32>
    %9 = vector.multi_reduction <minimumf>, %7, %cst_6 [1] : vector<128x128xf32> to vector<128xf32>
    %10 = vector.shape_cast %9 : vector<128xf32> to vector<128x1xf32>
    %11 = vector.broadcast %10 : vector<128x1xf32> to vector<128x128xf32>
    %12 = arith.cmpf oeq, %7, %11 : vector<128x128xf32>
    %c128_i32 = arith.constant 128 : i32
    %13 = vector.broadcast %c128_i32 : i32 to vector<128x128xi32>
    %14 = arith.select %12, %8, %13 : vector<128x128xi1>, vector<128x128xi32>
    %cst_7 = arith.constant dense<2147483647> : vector<128xi32>
    %15 = vector.multi_reduction <minsi>, %14, %cst_7 [1] : vector<128x128xi32> to vector<128xi32>
    %16 = vector.shape_cast %15 : vector<128xi32> to vector<128x1xi32>
    %17 = vector.broadcast %16 : vector<128x1xi32> to vector<128x128xi32>
    %18 = arith.cmpi eq, %8, %17 : vector<128x128xi32>
    %19 = arith.extui %18 : vector<128x128xi1> to vector<128x128xi32>
    %20 = arith.sitofp %19 : vector<128x128xi32> to vector<128x128xf32>
    %cst_8 = arith.constant dense<0.000000e+00> : vector<128x128xf32>
    %21 = tpu.matmul %20, %1, %cst_8 {dimension_numbers = #tpu.dot_dimension_numbers<[1], [0], [0], [1], [0, 0, 1, 1], [], []>} : vector<128x128xf32>, vector<128x128xf32>, vector<128x128xf32> -> vector<128x128xf32>
    %c0_9 = arith.constant 0 : index
    %c0_10 = arith.constant 0 : index
    %22 = vector.load %arg4[%c0_9, %c0_10] : memref<128x128xf32, #tpu.memory_space<vmem>>, vector<128x128xf32>
    tpu.vector_store %arg4[%c0_9, %c0_10], %21 {strides = array<i32>} : memref<128x128xf32, #tpu.memory_space<vmem>>, vector<128x128xf32>,
    %23 = tpu.iota {dimensions = array<i32: 0>} : vector<128x1xi32>
    %c128_i32_11 = arith.constant 128 : i32
    %24 = arith.muli %arg0, %c128_i32_11 : i32
    %25 = vector.broadcast %24 : i32 to vector<128x1xi32>
    %26 = arith.addi %23, %25 : vector<128x1xi32>
    %c128_i32_12 = arith.constant 128 : i32
    %27 = vector.broadcast %c128_i32_12 : i32 to vector<128x1xi32>
    %28 = arith.cmpi slt, %26, %27 : vector<128x1xi32>
    %29 = arith.extui %28 : vector<128x1xi1> to vector<128x1xi32>
    %30 = arith.sitofp %29 : vector<128x1xi32> to vector<128x1xf32>
    %31 = arith.subf %21, %0 : vector<128x128xf32>
    %32 = vector.broadcast %30 : vector<128x1xf32> to vector<128x128xf32>
    %33 = arith.mulf %31, %32 : vector<128x128xf32>
    %34 = arith.mulf %33, %33 : vector<128x128xf32>
    %cst_13 = arith.constant dense<0.000000e+00> : vector<128xf32>
    %35 = vector.multi_reduction <add>, %34, %cst_13 [0] : vector<128x128xf32> to vector<128xf32>
    %36 = vector.shape_cast %35 : vector<128xf32> to vector<1x128xf32>
    %37 = vector.shape_cast %36 : vector<1x128xf32> to vector<1x1x128xf32>
    %c0_14 = arith.constant 0 : index
    %c0_15 = arith.constant 0 : index
    %c0_16 = arith.constant 0 : index
    %38 = vector.load %arg5[%c0_14, %c0_15, %c0_16] : memref<1x1x128xf32, #tpu.memory_space<vmem>>, vector<1x1x128xf32>
    tpu.vector_store %arg5[%c0_14, %c0_15, %c0_16], %37 {strides = array<i32>} : memref<1x1x128xf32, #tpu.memory_space<vmem>>, vector<1x1x128xf32>,
    return
  }
  func.func @transform_0(%arg0: i32) -> (i32, i32) {
    %c0_i32 = arith.constant 0 : i32
    %c0_i32_0 = arith.constant 0 : i32
    return %arg0, %c0_i32 : i32, i32
  }
  func.func @transform_1(%arg0: i32) -> (i32, i32) {
    %c0_i32 = arith.constant 0 : i32
    %c0_i32_0 = arith.constant 0 : i32
    %c0_i32_1 = arith.constant 0 : i32
    return %c0_i32, %c0_i32_0 : i32, i32
  }
  func.func @transform_2(%arg0: i32) -> (i32, i32) {
    %c0_i32 = arith.constant 0 : i32
    %c0_i32_0 = arith.constant 0 : i32
    %c0_i32_1 = arith.constant 0 : i32
    return %c0_i32, %c0_i32_0 : i32, i32
  }
  func.func @transform_3(%arg0: i32) -> (i32, i32) {
    %c0_i32 = arith.constant 0 : i32
    %c0_i32_0 = arith.constant 0 : i32
    return %arg0, %c0_i32 : i32, i32
  }
  func.func @transform_4(%arg0: i32) -> (i32, i32, i32) {
    %c0_i32 = arith.constant 0 : i32
    %c0_i32_0 = arith.constant 0 : i32
    %c0_i32_1 = arith.constant 0 : i32
    return %arg0, %c0_i32, %c0_i32_0 : i32, i32, i32
  }
}

</mosaic_0001>

<llo_original>
// kernel: tpu_custom_call.1
$region0: #{tpu_custom_call.1}
  #allocation0 [shape = 'u32[]', space=smem, size = 0x4, offset = 0x4, fixed_abs, tag = 'smem constant byte address 0x4 - core index']
  #allocation1 [shape = 'u32[144,128]{1,0:T(1,128)}', space=vmem, size = 0x12000, scoped, tag = 'internal scratch']
  %s0 = inlined_call_operand.hbm [shape: f32[128,128], index: 0, kind: input, shape index: {}]
  %s1 = inlined_call_operand.hbm [shape: f32[128,128], index: 1, kind: input, shape index: {}]
  %s2 = inlined_call_operand.vmem [shape: f32[1,128], index: 2, kind: input, shape index: {}]
  %s3 = inlined_call_operand.hbm [shape: f32[128,128], index: 3, kind: output, shape index: {0}]
  %s4 = inlined_call_operand.hbm [shape: f32[1,1,128], index: 4, kind: output, shape index: {1}]
  %5 = xla_tuple %s3, %s4
  %s6 = sld [smem:[#allocation0]]
  $region38: #{tpu_custom_call.1} parent=0
    _
  %s8 = ssub.s32 1, %s6
  %s9 = scalar_select 0, %s8, %s6
  $region1: #{tpu_custom_call.1} parent=0
    #allocation2 [shape = 'u8[65536]{0}', space=vmem, size = 0x10000, scoped, tag = 'input window, operand 0, single buffered']
    #allocation3 [shape = 's32[1]{0}', space=sflag, size = 0x4, scoped, tag = 'scoped memory for tpu_custom_call.1']
    #allocation4 [shape = 's32[1]{0}', space=sflag, size = 0x4, scoped, tag = 'scoped memory for tpu_custom_call.1']
    #allocation5 [shape = 'u8[65536]{0}', space=vmem, size = 0x10000, scoped, tag = 'input window, operand 1, single buffered']
    #allocation6 [shape = 's32[1]{0}', space=sflag, size = 0x4, scoped, tag = 'scoped memory for tpu_custom_call.1']
    #allocation7 [shape = 'u8[65536]{0}', space=vmem, size = 0x10000, scoped, tag = 'output window, operand 0, single buffered']
    #allocation8 [shape = 'u8[512]{0}', space=vmem, size = 0x400, scoped, tag = 'output window, operand 1, single buffered']
    #allocation9 [shape = 's32[1]{0}', space=sflag, size = 0x4, scoped, tag = 'scoped memory for tpu_custom_call.1']
    %10 = vsyncpa [#allocation3], 0
    %11 = vsyncpa [#allocation6], 0
    %12 = vsyncpa [#allocation4], 0
    %13 = vsyncpa [#allocation9], 0
    // Predicated region
    $region2: #{tpu_custom_call.1} parent=1 // pred_check
      _
    $region3: #{tpu_custom_call.1} parent=1 // pred_check_branch
      %15 = sbr.rel (0) target = $region5
    $region4: #{tpu_custom_call.1} parent=1 // pred_region
      %s17 = ssub.s32 2048, 2048
      %18 = vsyncadd [#allocation3], %s17
      %s19 = sshll.u32 [#allocation2], 4
      %s20 = int_to_ptr.vmem [resolvable:$true] %s19
      %25 = dma.hbm_to_vmem [thread:$0]  %s0, 2048, %s20, [#allocation3], 128, 128, 8
    $region5: #{tpu_custom_call.1} parent=1 // pred_fallthru
      _
    // Predicated region
    $region6: #{tpu_custom_call.1} parent=1 // pred_check
      _
    $region7: #{tpu_custom_call.1} parent=1 // pred_check_branch
      %27 = sbr.rel (0) target = $region9
    $region8: #{tpu_custom_call.1} parent=1 // pred_region
      %s29 = ssub.s32 2048, 2048
      %30 = vsyncadd [#allocation6], %s29
      %s31 = sshll.u32 [#allocation5], 4
      %s32 = int_to_ptr.vmem [resolvable:$true] %s31
      %37 = dma.hbm_to_vmem [thread:$0]  %s1, 2048, %s32, [#allocation6], 128, 128, 8
    $region9: #{tpu_custom_call.1} parent=1 // pred_fallthru
      _
    // Predicated region
    $region10: #{tpu_custom_call.1} parent=1 // pred_check
      _
    $region11: #{tpu_custom_call.1} parent=1 // pred_check_branch
      %39 = sbr.rel (0) target = $region13
    $region12: #{tpu_custom_call.1} parent=1 // pred_region
      _
    $region13: #{tpu_custom_call.1} parent=1 // pred_fallthru
      _
    // Predicated region
    $region14: #{tpu_custom_call.1} parent=1 // pred_check
      _
    $region15: #{tpu_custom_call.1} parent=1 // pred_check_branch
      %41 = sbr.rel (0) target = $region17
    $region16: #{tpu_custom_call.1} parent=1 // pred_region
      %42 = dma.done [#allocation3], 2048
    $region17: #{tpu_custom_call.1} parent=1 // pred_fallthru
      _
    // Predicated region
    $region18: #{tpu_custom_call.1} parent=1 // pred_check
      _
    $region19: #{tpu_custom_call.1} parent=1 // pred_check_branch
      %44 = sbr.rel (0) target = $region21
    $region20: #{tpu_custom_call.1} parent=1 // pred_region
      %45 = dma.done [#allocation6], 2048
    $region21: #{tpu_custom_call.1} parent=1 // pred_fallthru
      _
    %v46 = vld [vmem:[#allocation2] sm:$0xff]
    %v47 = vld [vmem:[#allocation2 + $0x8] sm:$0xff]
    %v48 = vld [vmem:[#allocation2 + $0x10] sm:$0xff]
    %v49 = vld [vmem:[#allocation2 + $0x18] sm:$0xff]
    %v50 = vld [vmem:[#allocation2 + $0x20] sm:$0xff]
    %v51 = vld [vmem:[#allocation2 + $0x28] sm:$0xff]
    %v52 = vld [vmem:[#allocation2 + $0x30] sm:$0xff]
    %v53 = vld [vmem:[#allocation2 + $0x38] sm:$0xff]
    %v54 = vld [vmem:[#allocation2 + $0x40] sm:$0xff]
    %v55 = vld [vmem:[#allocation2 + $0x48] sm:$0xff]
    %v56 = vld [vmem:[#allocation2 + $0x50] sm:$0xff]
    %v57 = vld [vmem:[#allocation2 + $0x58] sm:$0xff]
    %v58 = vld [vmem:[#allocation2 + $0x60] sm:$0xff]
    %v59 = vld [vmem:[#allocation2 + $0x68] sm:$0xff]
    %v60 = vld [vmem:[#allocation2 + $0x70] sm:$0xff]
    %v61 = vld [vmem:[#allocation2 + $0x78] sm:$0xff]
    %v62 = vld [vmem:[#allocation5] sm:$0xff]
    %v63 = vld [vmem:[#allocation5 + $0x8] sm:$0xff]
    %v64 = vld [vmem:[#allocation5 + $0x10] sm:$0xff]
    %v65 = vld [vmem:[#allocation5 + $0x18] sm:$0xff]
    %v66 = vld [vmem:[#allocation5 + $0x20] sm:$0xff]
    %v67 = vld [vmem:[#allocation5 + $0x28] sm:$0xff]
    %v68 = vld [vmem:[#allocation5 + $0x30] sm:$0xff]
    %v69 = vld [vmem:[#allocation5 + $0x38] sm:$0xff]
    %v70 = vld [vmem:[#allocation5 + $0x40] sm:$0xff]
    %v71 = vld [vmem:[#allocation5 + $0x48] sm:$0xff]
    %v72 = vld [vmem:[#allocation5 + $0x50] sm:$0xff]
    %v73 = vld [vmem:[#allocation5 + $0x58] sm:$0xff]
    %v74 = vld [vmem:[#allocation5 + $0x60] sm:$0xff]
    %v75 = vld [vmem:[#allocation5 + $0x68] sm:$0xff]
    %v76 = vld [vmem:[#allocation5 + $0x70] sm:$0xff]
    %v77 = vld [vmem:[#allocation5 + $0x78] sm:$0xff]
    %v78 = vld [vmem:[%s2] sm:$0x1]
    %79 = vmatprep.subr.mxu0 0.0
    %80 = vmatpush1.xpose.msra.mxu0 %v62
    %81 = vmatprep.subr.mxu0 0.0
    %82 = vmatpush1.xpose.msra.mxu0 %v63
    %83 = vmatprep.subr.mxu0 0.0
    %84 = vmatpush1.xpose.msra.mxu0 %v64
    %85 = vmatprep.subr.mxu0 0.0
    %86 = vmatpush1.xpose.msra.mxu0 %v65
    %87 = vmatprep.subr.mxu0 0.0
    %88 = vmatpush1.xpose.msra.mxu0 %v66
    %89 = vmatprep.subr.mxu0 0.0
    %90 = vmatpush1.xpose.msra.mxu0 %v67
    %91 = vmatprep.subr.mxu0 0.0
    %92 = vmatpush1.xpose.msra.mxu0 %v68
    %93 = vmatprep.subr.mxu0 0.0
    %94 = vmatpush1.xpose.msra.mxu0 %v69
    %95 = vmatprep.subr.mxu0 0.0
    %96 = vmatpush1.xpose.msra.mxu0 %v70
    %97 = vmatprep.subr.mxu0 0.0
    %98 = vmatpush1.xpose.msra.mxu0 %v71
    %99 = vmatprep.subr.mxu0 0.0
    %100 = vmatpush1.xpose.msra.mxu0 %v72
    %101 = vmatprep.subr.mxu0 0.0
    %102 = vmatpush1.xpose.msra.mxu0 %v73
    %103 = vmatprep.subr.mxu0 0.0
    %104 = vmatpush1.xpose.msra.mxu0 %v74
    %105 = vmatprep.subr.mxu0 0.0
    %106 = vmatpush1.xpose.msra.mxu0 %v75
    %107 = vmatprep.subr.mxu0 0.0
    %108 = vmatpush1.xpose.msra.mxu0 %v76
    %109 = vmatprep.subr.mxu0 0.0
    %110 = vmatpush1.xpose.msra.mxu0 %v77
    %111 = vmatprep.subr.mxu0 0.0
    %112 = vmatpush1.xpose.msra.mxu0 0.0
    %113 = vmatprep.subr.mxu0 0.0
    %114 = vmatpush1.xpose.msra.mxu0 0.0
    %115 = vmatprep.subr.mxu0 0.0
    %116 = vmatpush1.xpose.msra.mxu0 0.0
    %117 = vmatprep.subr.mxu0 0.0
    %118 = vmatpush1.xpose.msra.mxu0 0.0
    %119 = vmatprep.subr.mxu0 0.0
    %120 = vmatpush1.xpose.msra.mxu0 0.0
    %121 = vmatprep.subr.mxu0 0.0
    %122 = vmatpush1.xpose.msra.mxu0 0.0
    %123 = vmatprep.subr.mxu0 0.0
    %124 = vmatpush1.xpose.msra.mxu0 0.0
    %125 = vmatprep.subr.mxu0 0.0
    %126 = vmatpush1.xpose.msra.mxu0 0.0
    %127 = vmatprep.subr.mxu0 0.0
    %128 = vmatpush1.xpose.msra.mxu0 0.0
    %129 = vmatprep.subr.mxu0 0.0
    %130 = vmatpush1.xpose.msra.mxu0 0.0
    %131 = vmatprep.subr.mxu0 0.0
    %132 = vmatpush1.xpose.msra.mxu0 0.0
    %133 = vmatprep.subr.mxu0 0.0
    %134 = vmatpush1.xpose.msra.mxu0 0.0
    %135 = vmatprep.subr.mxu0 0.0
    %136 = vmatpush1.xpose.msra.mxu0 0.0
    %137 = vmatprep.subr.mxu0 0.0
    %138 = vmatpush1.xpose.msra.mxu0 0.0
    %139 = vmatprep.subr.mxu0 0.0
    %140 = vmatpush1.xpose.msra.mxu0 0.0
    %141 = vmatprep.subr.mxu0 0.0
    %142 = vmatpush1.xpose.msra.mxu0 0.0
    %143 = vmatprep.mubr.f32.mxu0 0.0
    %144 = vmatmul.mubr.f32.gmra.mrb[0].mxu0 %v46
    %v145 = vpop.f32.mrb[0].mxu0
    %v146 = vadd.f32 0.0, %v145
    %v147 = vpop.f32.mrb[0].mxu0
    %148 = vmatprep.mubr.f32.mxu0 0.0
    %149 = vmatmul.mubr.f32.gmra.mrb[0].mxu0 %v47
    %v150 = vpop.f32.mrb[0].mxu0
    %v151 = vadd.f32 0.0, %v150
    %v152 = vpop.f32.mrb[0].mxu0
    %153 = vmatprep.mubr.f32.mxu0 0.0
    %154 = vmatmul.mubr.f32.gmra.mrb[0].mxu0 %v48
    %v155 = vpop.f32.mrb[0].mxu0
    %v156 = vadd.f32 0.0, %v155
    %v157 = vpop.f32.mrb[0].mxu0
    %158 = vmatprep.mubr.f32.mxu0 0.0
    %159 = vmatmul.mubr.f32.gmra.mrb[0].mxu0 %v49
    %v160 = vpop.f32.mrb[0].mxu0
    %v161 = vadd.f32 0.0, %v160
    %v162 = vpop.f32.mrb[0].mxu0
    %163 = vmatprep.mubr.f32.mxu0 0.0
    %164 = vmatmul.mubr.f32.gmra.mrb[0].mxu0 %v50
    %v165 = vpop.f32.mrb[0].mxu0
    %v166 = vadd.f32 0.0, %v165
    %v167 = vpop.f32.mrb[0].mxu0
    %168 = vmatprep.mubr.f32.mxu0 0.0
    %169 = vmatmul.mubr.f32.gmra.mrb[0].mxu0 %v51
    %v170 = vpop.f32.mrb[0].mxu0
    %v171 = vadd.f32 0.0, %v170
    %v172 = vpop.f32.mrb[0].mxu0
    %173 = vmatprep.mubr.f32.mxu0 0.0
    %174 = vmatmul.mubr.f32.gmra.mrb[0].mxu0 %v52
    %v175 = vpop.f32.mrb[0].mxu0
    %v176 = vadd.f32 0.0, %v175
    %v177 = vpop.f32.mrb[0].mxu0
    %178 = vmatprep.mubr.f32.mxu0 0.0
    %179 = vmatmul.mubr.f32.gmra.mrb[0].mxu0 %v53
    %v180 = vpop.f32.mrb[0].mxu0
    %v181 = vadd.f32 0.0, %v180
    %v182 = vpop.f32.mrb[0].mxu0
    %183 = vmatprep.mubr.f32.mxu0 0.0
    %184 = vmatmul.mubr.f32.gmra.mrb[0].mxu0 %v54
    %v185 = vpop.f32.mrb[0].mxu0
    %v186 = vadd.f32 0.0, %v185
    %v187 = vpop.f32.mrb[0].mxu0
    %188 = vmatprep.mubr.f32.mxu0 0.0
    %189 = vmatmul.mubr.f32.gmra.mrb[0].mxu0 %v55
    %v190 = vpop.f32.mrb[0].mxu0
    %v191 = vadd.f32 0.0, %v190
    %v192 = vpop.f32.mrb[0].mxu0
    %193 = vmatprep.mubr.f32.mxu0 0.0
    %194 = vmatmul.mubr.f32.gmra.mrb[0].mxu0 %v56
    %v195 = vpop.f32.mrb[0].mxu0
    %v196 = vadd.f32 0.0, %v195
    %v197 = vpop.f32.mrb[0].mxu0
    %198 = vmatprep.mubr.f32.mxu0 0.0
    %199 = vmatmul.mubr.f32.gmra.mrb[0].mxu0 %v57
    %v200 = vpop.f32.mrb[0].mxu0
    %v201 = vadd.f32 0.0, %v200
    %v202 = vpop.f32.mrb[0].mxu0
    %203 = vmatprep.mubr.f32.mxu0 0.0
    %204 = vmatmul.mubr.f32.gmra.mrb[0].mxu0 %v58
    %v205 = vpop.f32.mrb[0].mxu0
    %v206 = vadd.f32 0.0, %v205
    %v207 = vpop.f32.mrb[0].mxu0
    %208 = vmatprep.mubr.f32.mxu0 0.0
    %209 = vmatmul.mubr.f32.gmra.mrb[0].mxu0 %v59
    %v210 = vpop.f32.mrb[0].mxu0
    %v211 = vadd.f32 0.0, %v210
    %v212 = vpop.f32.mrb[0].mxu0
    %213 = vmatprep.mubr.f32.mxu0 0.0
    %214 = vmatmul.mubr.f32.gmra.mrb[0].mxu0 %v60
    %v215 = vpop.f32.mrb[0].mxu0
    %v216 = vadd.f32 0.0, %v215
    %v217 = vpop.f32.mrb[0].mxu0
    %218 = vmatprep.mubr.f32.mxu0 0.0
    %219 = vmatmul.mubr.f32.gmra.mrb[0].mxu0 %v61
    %v220 = vpop.f32.mrb[0].mxu0
    %v221 = vadd.f32 0.0, %v220
    %v222 = vpop.f32.mrb[0].mxu0
    %223 = vdwg.mxu0
    %v224 = vmul.f32 %v146, 2.0
    %v225 = vmul.f32 %v151, 2.0
    %v226 = vmul.f32 %v156, 2.0
    %v227 = vmul.f32 %v161, 2.0
    %v228 = vmul.f32 %v166, 2.0
    %v229 = vmul.f32 %v171, 2.0
    %v230 = vmul.f32 %v176, 2.0
    %v231 = vmul.f32 %v181, 2.0
    %v232 = vmul.f32 %v186, 2.0
    %v233 = vmul.f32 %v191, 2.0
    %v234 = vmul.f32 %v196, 2.0
    %v235 = vmul.f32 %v201, 2.0
    %v236 = vmul.f32 %v206, 2.0
    %v237 = vmul.f32 %v211, 2.0
    %v238 = vmul.f32 %v216, 2.0
    %v239 = vmul.f32 %v221, 2.0
    %v241 = vlaneseq
    %v242 = vshrl.u32 %v241, 7
    %v243 = vsub.s32 0, %v242
    %v244 = vrot.slane %v78, %v243
    %v246 = vsub.f32 %v244, %v224
    %v247 = vsub.f32 %v244, %v225
    %v248 = vsub.f32 %v244, %v226
    %v249 = vsub.f32 %v244, %v227
    %v250 = vsub.f32 %v244, %v228
    %v251 = vsub.f32 %v244, %v229
    %v252 = vsub.f32 %v244, %v230
    %v253 = vsub.f32 %v244, %v231
    %v254 = vsub.f32 %v244, %v232
    %v255 = vsub.f32 %v244, %v233
    %v256 = vsub.f32 %v244, %v234
    %v257 = vsub.f32 %v244, %v235
    %v258 = vsub.f32 %v244, %v236
    %v259 = vsub.f32 %v244, %v237
    %v260 = vsub.f32 %v244, %v238
    %v261 = vsub.f32 %v244, %v239
    %v262 = vlaneseq
    %v263 = vand.u32 %v262, 127
    %264 = vmin.xlane.f32.xlu0 %v246
    %v265 = vpop.xlane.xlu0 %264
    %266 = vmin.xlane.f32.xlu0 %v247
    %v267 = vpop.xlane.xlu0 %266
    %268 = vmin.xlane.f32.xlu0 %v248
    %v269 = vpop.xlane.xlu0 %268
    %270 = vmin.xlane.f32.xlu0 %v249
    %v271 = vpop.xlane.xlu0 %270
    %272 = vmin.xlane.f32.xlu0 %v250
    %v273 = vpop.xlane.xlu0 %272
    %274 = vmin.xlane.f32.xlu0 %v251
    %v275 = vpop.xlane.xlu0 %274
    %276 = vmin.xlane.f32.xlu0 %v252
    %v277 = vpop.xlane.xlu0 %276
    %278 = vmin.xlane.f32.xlu0 %v253
    %v279 = vpop.xlane.xlu0 %278
    %280 = vmin.xlane.f32.xlu0 %v254
    %v281 = vpop.xlane.xlu0 %280
    %282 = vmin.xlane.f32.xlu0 %v255
    %v283 = vpop.xlane.xlu0 %282
    %284 = vmin.xlane.f32.xlu0 %v256
    %v285 = vpop.xlane.xlu0 %284
    %286 = vmin.xlane.f32.xlu0 %v257
    %v287 = vpop.xlane.xlu0 %286
    %288 = vmin.xlane.f32.xlu0 %v258
    %v289 = vpop.xlane.xlu0 %288
    %290 = vmin.xlane.f32.xlu0 %v259
    %v291 = vpop.xlane.xlu0 %290
    %292 = vmin.xlane.f32.xlu0 %v260
    %v293 = vpop.xlane.xlu0 %292
    %294 = vmin.xlane.f32.xlu0 %v261
    %v295 = vpop.xlane.xlu0 %294
    %vm296 = vcmp.eq.f32.partialorder %v246, %v265
    %vm297 = vcmp.eq.f32.partialorder %v247, %v267
    %vm298 = vcmp.eq.f32.partialorder %v248, %v269
    %vm299 = vcmp.eq.f32.partialorder %v249, %v271
    %vm300 = vcmp.eq.f32.partialorder %v250, %v273
    %vm301 = vcmp.eq.f32.partialorder %v251, %v275
    %vm302 = vcmp.eq.f32.partialorder %v252, %v277
    %vm303 = vcmp.eq.f32.partialorder %v253, %v279
    %vm304 = vcmp.eq.f32.partialorder %v254, %v281
    %vm305 = vcmp.eq.f32.partialorder %v255, %v283
    %vm306 = vcmp.eq.f32.partialorder %v256, %v285
    %vm307 = vcmp.eq.f32.partialorder %v257, %v287
    %vm308 = vcmp.eq.f32.partialorder %v258, %v289
    %vm309 = vcmp.eq.f32.partialorder %v259, %v291
    %vm310 = vcmp.eq.f32.partialorder %v260, %v293
    %vm311 = vcmp.eq.f32.partialorder %v261, %v295
    %v312 = vsel %vm296, %v263, 128
    %v313 = vsel %vm297, %v263, 128
    %v314 = vsel %vm298, %v263, 128
    %v315 = vsel %vm299, %v263, 128
    %v316 = vsel %vm300, %v263, 128
    %v317 = vsel %vm301, %v263, 128
    %v318 = vsel %vm302, %v263, 128
    %v319 = vsel %vm303, %v263, 128
    %v320 = vsel %vm304, %v263, 128
    %v321 = vsel %vm305, %v263, 128
    %v322 = vsel %vm306, %v263, 128
    %v323 = vsel %vm307, %v263, 128
    %v324 = vsel %vm308, %v263, 128
    %v325 = vsel %vm309, %v263, 128
    %v326 = vsel %vm310, %v263, 128
    %v327 = vsel %vm311, %v263, 128
    %v328 = vand.u32 %v312, 65535
    %v329 = vshra.s32 %v312, 16
    %v330 = vcvt.s32.f32 %v328
    %v331 = vcvt.s32.f32 %v329
    %332 = vmin.xlane.f32.xlu0 %v331
    %v333 = vpop.xlane.xlu0 %332
    %vm334 = vcmp.eq.f32.partialorder %v331, %v333
    %v335 = vsel %vm334, %v330, inf
    %336 = vmin.xlane.f32.xlu0 %v335
    %v337 = vpop.xlane.xlu0 %336
    %v338 = vcvt.f32.s32 %v337
    %v339 = vcvt.f32.s32 %v333
    %v340 = vshll.u32 %v339, 16
    %v341 = vadd.s32 %v340, %v338
    %v342 = vand.u32 %v313, 65535
    %v343 = vshra.s32 %v313, 16
    %v344 = vcvt.s32.f32 %v342
    %v345 = vcvt.s32.f32 %v343
    %346 = vmin.xlane.f32.xlu0 %v345
    %v347 = vpop.xlane.xlu0 %346
    %vm348 = vcmp.eq.f32.partialorder %v345, %v347
    %v349 = vsel %vm348, %v344, inf
    %350 = vmin.xlane.f32.xlu0 %v349
    %v351 = vpop.xlane.xlu0 %350
    %v352 = vcvt.f32.s32 %v351
    %v353 = vcvt.f32.s32 %v347
    %v354 = vshll.u32 %v353, 16
    %v355 = vadd.s32 %v354, %v352
    %v356 = vand.u32 %v314, 65535
    %v357 = vshra.s32 %v314, 16
    %v358 = vcvt.s32.f32 %v356
    %v359 = vcvt.s32.f32 %v357
    %360 = vmin.xlane.f32.xlu0 %v359
    %v361 = vpop.xlane.xlu0 %360
    %vm362 = vcmp.eq.f32.partialorder %v359, %v361
    %v363 = vsel %vm362, %v358, inf
    %364 = vmin.xlane.f32.xlu0 %v363
    %v365 = vpop.xlane.xlu0 %364
    %v366 = vcvt.f32.s32 %v365
    %v367 = vcvt.f32.s32 %v361
    %v368 = vshll.u32 %v367, 16
    %v369 = vadd.s32 %v368, %v366
    %v370 = vand.u32 %v315, 65535
    %v371 = vshra.s32 %v315, 16
    %v372 = vcvt.s32.f32 %v370
    %v373 = vcvt.s32.f32 %v371
    %374 = vmin.xlane.f32.xlu0 %v373
    %v375 = vpop.xlane.xlu0 %374
    %vm376 = vcmp.eq.f32.partialorder %v373, %v375
    %v377 = vsel %vm376, %v372, inf
    %378 = vmin.xlane.f32.xlu0 %v377
    %v379 = vpop.xlane.xlu0 %378
    %v380 = vcvt.f32.s32 %v379
    %v381 = vcvt.f32.s32 %v375
    %v382 = vshll.u32 %v381, 16
    %v383 = vadd.s32 %v382, %v380
    %v384 = vand.u32 %v316, 65535
    %v385 = vshra.s32 %v316, 16
    %v386 = vcvt.s32.f32 %v384
    %v387 = vcvt.s32.f32 %v385
    %388 = vmin.xlane.f32.xlu0 %v387
    %v389 = vpop.xlane.xlu0 %388
    %vm390 = vcmp.eq.f32.partialorder %v387, %v389
    %v391 = vsel %vm390, %v386, inf
    %392 = vmin.xlane.f32.xlu0 %v391
    %v393 = vpop.xlane.xlu0 %392
    %v394 = vcvt.f32.s32 %v393
    %v395 = vcvt.f32.s32 %v389
    %v396 = vshll.u32 %v395, 16
    %v397 = vadd.s32 %v396, %v394
    %v398 = vand.u32 %v317, 65535
    %v399 = vshra.s32 %v317, 16
    %v400 = vcvt.s32.f32 %v398
    %v401 = vcvt.s32.f32 %v399
    %402 = vmin.xlane.f32.xlu0 %v401
    %v403 = vpop.xlane.xlu0 %402
    %vm404 = vcmp.eq.f32.partialorder %v401, %v403
    %v405 = vsel %vm404, %v400, inf
    %406 = vmin.xlane.f32.xlu0 %v405
    %v407 = vpop.xlane.xlu0 %406
    %v408 = vcvt.f32.s32 %v407
    %v409 = vcvt.f32.s32 %v403
    %v410 = vshll.u32 %v409, 16
    %v411 = vadd.s32 %v410, %v408
    %v412 = vand.u32 %v318, 65535
    %v413 = vshra.s32 %v318, 16
    %v414 = vcvt.s32.f32 %v412
    %v415 = vcvt.s32.f32 %v413
    %416 = vmin.xlane.f32.xlu0 %v415
    %v417 = vpop.xlane.xlu0 %416
    %vm418 = vcmp.eq.f32.partialorder %v415, %v417
    %v419 = vsel %vm418, %v414, inf
    %420 = vmin.xlane.f32.xlu0 %v419
    %v421 = vpop.xlane.xlu0 %420
    %v422 = vcvt.f32.s32 %v421
    %v423 = vcvt.f32.s32 %v417
    %v424 = vshll.u32 %v423, 16
    %v425 = vadd.s32 %v424, %v422
    %v426 = vand.u32 %v319, 65535
    %v427 = vshra.s32 %v319, 16
    %v428 = vcvt.s32.f32 %v426
    %v429 = vcvt.s32.f32 %v427
    %430 = vmin.xlane.f32.xlu0 %v429
    %v431 = vpop.xlane.xlu0 %430
    %vm432 = vcmp.eq.f32.partialorder %v429, %v431
    %v433 = vsel %vm432, %v428, inf
    %434 = vmin.xlane.f32.xlu0 %v433
    %v435 = vpop.xlane.xlu0 %434
    %v436 = vcvt.f32.s32 %v435
    %v437 = vcvt.f32.s32 %v431
    %v438 = vshll.u32 %v437, 16
    %v439 = vadd.s32 %v438, %v436
    %v440 = vand.u32 %v320, 65535
    %v441 = vshra.s32 %v320, 16
    %v442 = vcvt.s32.f32 %v440
    %v443 = vcvt.s32.f32 %v441
    %444 = vmin.xlane.f32.xlu0 %v443
    %v445 = vpop.xlane.xlu0 %444
    %vm446 = vcmp.eq.f32.partialorder %v443, %v445
    %v447 = vsel %vm446, %v442, inf
    %448 = vmin.xlane.f32.xlu0 %v447
    %v449 = vpop.xlane.xlu0 %448
    %v450 = vcvt.f32.s32 %v449
    %v451 = vcvt.f32.s32 %v445
    %v452 = vshll.u32 %v451, 16
    %v453 = vadd.s32 %v452, %v450
    %v454 = vand.u32 %v321, 65535
    %v455 = vshra.s32 %v321, 16
    %v456 = vcvt.s32.f32 %v454
    %v457 = vcvt.s32.f32 %v455
    %458 = vmin.xlane.f32.xlu0 %v457
    %v459 = vpop.xlane.xlu0 %458
    %vm460 = vcmp.eq.f32.partialorder %v457, %v459
    %v461 = vsel %vm460, %v456, inf
    %462 = vmin.xlane.f32.xlu0 %v461
    %v463 = vpop.xlane.xlu0 %462
    %v464 = vcvt.f32.s32 %v463
    %v465 = vcvt.f32.s32 %v459
    %v466 = vshll.u32 %v465, 16
    %v467 = vadd.s32 %v466, %v464
    %v468 = vand.u32 %v322, 65535
    %v469 = vshra.s32 %v322, 16
    %v470 = vcvt.s32.f32 %v468
    %v471 = vcvt.s32.f32 %v469
    %472 = vmin.xlane.f32.xlu0 %v471
    %v473 = vpop.xlane.xlu0 %472
    %vm474 = vcmp.eq.f32.partialorder %v471, %v473
    %v475 = vsel %vm474, %v470, inf
    %476 = vmin.xlane.f32.xlu0 %v475
    %v477 = vpop.xlane.xlu0 %476
    %v478 = vcvt.f32.s32 %v477
    %v479 = vcvt.f32.s32 %v473
    %v480 = vshll.u32 %v479, 16
    %v481 = vadd.s32 %v480, %v478
    %v482 = vand.u32 %v323, 65535
    %v483 = vshra.s32 %v323, 16
    %v484 = vcvt.s32.f32 %v482
    %v485 = vcvt.s32.f32 %v483
    %486 = vmin.xlane.f32.xlu0 %v485
    %v487 = vpop.xlane.xlu0 %486
    %vm488 = vcmp.eq.f32.partialorder %v485, %v487
    %v489 = vsel %vm488, %v484, inf
    %490 = vmin.xlane.f32.xlu0 %v489
    %v491 = vpop.xlane.xlu0 %490
    %v492 = vcvt.f32.s32 %v491
    %v493 = vcvt.f32.s32 %v487
    %v494 = vshll.u32 %v493, 16
    %v495 = vadd.s32 %v494, %v492
    %v496 = vand.u32 %v324, 65535
    %v497 = vshra.s32 %v324, 16
    %v498 = vcvt.s32.f32 %v496
    %v499 = vcvt.s32.f32 %v497
    %500 = vmin.xlane.f32.xlu0 %v499
    %v501 = vpop.xlane.xlu0 %500
    %vm502 = vcmp.eq.f32.partialorder %v499, %v501
    %v503 = vsel %vm502, %v498, inf
    %504 = vmin.xlane.f32.xlu0 %v503
    %v505 = vpop.xlane.xlu0 %504
    %v506 = vcvt.f32.s32 %v505
    %v507 = vcvt.f32.s32 %v501
    %v508 = vshll.u32 %v507, 16
    %v509 = vadd.s32 %v508, %v506
    %v510 = vand.u32 %v325, 65535
    %v511 = vshra.s32 %v325, 16
    %v512 = vcvt.s32.f32 %v510
    %v513 = vcvt.s32.f32 %v511
    %514 = vmin.xlane.f32.xlu0 %v513
    %v515 = vpop.xlane.xlu0 %514
    %vm516 = vcmp.eq.f32.partialorder %v513, %v515
    %v517 = vsel %vm516, %v512, inf
    %518 = vmin.xlane.f32.xlu0 %v517
    %v519 = vpop.xlane.xlu0 %518
    %v520 = vcvt.f32.s32 %v519
    %v521 = vcvt.f32.s32 %v515
    %v522 = vshll.u32 %v521, 16
    %v523 = vadd.s32 %v522, %v520
    %v524 = vand.u32 %v326, 65535
    %v525 = vshra.s32 %v326, 16
    %v526 = vcvt.s32.f32 %v524
    %v527 = vcvt.s32.f32 %v525
    %528 = vmin.xlane.f32.xlu0 %v527
    %v529 = vpop.xlane.xlu0 %528
    %vm530 = vcmp.eq.f32.partialorder %v527, %v529
    %v531 = vsel %vm530, %v526, inf
    %532 = vmin.xlane.f32.xlu0 %v531
    %v533 = vpop.xlane.xlu0 %532
    %v534 = vcvt.f32.s32 %v533
    %v535 = vcvt.f32.s32 %v529
    %v536 = vshll.u32 %v535, 16
    %v537 = vadd.s32 %v536, %v534
    %v538 = vand.u32 %v327, 65535
    %v539 = vshra.s32 %v327, 16
    %v540 = vcvt.s32.f32 %v538
    %v541 = vcvt.s32.f32 %v539
    %542 = vmin.xlane.f32.xlu0 %v541
    %v543 = vpop.xlane.xlu0 %542
    %vm544 = vcmp.eq.f32.partialorder %v541, %v543
    %v545 = vsel %vm544, %v540, inf
    %546 = vmin.xlane.f32.xlu0 %v545
    %v547 = vpop.xlane.xlu0 %546
    %v548 = vcvt.f32.s32 %v547
    %v549 = vcvt.f32.s32 %v543
    %v550 = vshll.u32 %v549, 16
    %v551 = vadd.s32 %v550, %v548
    %vm552 = vcmp.eq.s32.totalorder %v263, %v341
    %vm553 = vcmp.eq.s32.totalorder %v263, %v355
    %vm554 = vcmp.eq.s32.totalorder %v263, %v369
    %vm555 = vcmp.eq.s32.totalorder %v263, %v383
    %vm556 = vcmp.eq.s32.totalorder %v263, %v397
    %vm557 = vcmp.eq.s32.totalorder %v263, %v411
    %vm558 = vcmp.eq.s32.totalorder %v263, %v425
    %vm559 = vcmp.eq.s32.totalorder %v263, %v439
    %vm560 = vcmp.eq.s32.totalorder %v263, %v453
    %vm561 = vcmp.eq.s32.totalorder %v263, %v467
    %vm562 = vcmp.eq.s32.totalorder %v263, %v481
    %vm563 = vcmp.eq.s32.totalorder %v263, %v495
    %vm564 = vcmp.eq.s32.totalorder %v263, %v509
    %vm565 = vcmp.eq.s32.totalorder %v263, %v523
    %vm566 = vcmp.eq.s32.totalorder %v263, %v537
    %vm567 = vcmp.eq.s32.totalorder %v263, %v551
    %v568 = vsel %vm552, 1, 0
    %v569 = vsel %vm553, 1, 0
    %v570 = vsel %vm554, 1, 0
    %v571 = vsel %vm555, 1, 0
    %v572 = vsel %vm556, 1, 0
    %v573 = vsel %vm557, 1, 0
    %v574 = vsel %vm558, 1, 0
    %v575 = vsel %vm559, 1, 0
    %v576 = vsel %vm560, 1, 0
    %v577 = vsel %vm561, 1, 0
    %v578 = vsel %vm562, 1, 0
    %v579 = vsel %vm563, 1, 0
    %v580 = vsel %vm564, 1, 0
    %v581 = vsel %vm565, 1, 0
    %v582 = vsel %vm566, 1, 0
    %v583 = vsel %vm567, 1, 0
    %v584 = vcvt.s32.f32 %v568
    %v585 = vcvt.s32.f32 %v569
    %v586 = vcvt.s32.f32 %v570
    %v587 = vcvt.s32.f32 %v571
    %v588 = vcvt.s32.f32 %v572
    %v589 = vcvt.s32.f32 %v573
    %v590 = vcvt.s32.f32 %v574
    %v591 = vcvt.s32.f32 %v575
    %v592 = vcvt.s32.f32 %v576
    %v593 = vcvt.s32.f32 %v577
    %v594 = vcvt.s32.f32 %v578
    %v595 = vcvt.s32.f32 %v579
    %v596 = vcvt.s32.f32 %v580
    %v597 = vcvt.s32.f32 %v581
    %v598 = vcvt.s32.f32 %v582
    %v599 = vcvt.s32.f32 %v583
    %600 = vmatprep.subr.mxu0 0.0
    %601 = vmatpush1.msra.mxu0 %v62
    %602 = vmatprep.subr.mxu0 0.0
    %603 = vmatpush1.msra.mxu0 %v63
    %604 = vmatprep.subr.mxu0 0.0
    %605 = vmatpush1.msra.mxu0 %v64
    %606 = vmatprep.subr.mxu0 0.0
    %607 = vmatpush1.msra.mxu0 %v65
    %608 = vmatprep.subr.mxu0 0.0
    %609 = vmatpush1.msra.mxu0 %v66
    %610 = vmatprep.subr.mxu0 0.0
    %611 = vmatpush1.msra.mxu0 %v67
    %612 = vmatprep.subr.mxu0 0.0
    %613 = vmatpush1.msra.mxu0 %v68
    %614 = vmatprep.subr.mxu0 0.0
    %615 = vmatpush1.msra.mxu0 %v69
    %616 = vmatprep.subr.mxu0 0.0
    %617 = vmatpush1.msra.mxu0 %v70
    %618 = vmatprep.subr.mxu0 0.0
    %619 = vmatpush1.msra.mxu0 %v71
    %620 = vmatprep.subr.mxu0 0.0
    %621 = vmatpush1.msra.mxu0 %v72
    %622 = vmatprep.subr.mxu0 0.0
    %623 = vmatpush1.msra.mxu0 %v73
    %624 = vmatprep.subr.mxu0 0.0
    %625 = vmatpush1.msra.mxu0 %v74
    %626 = vmatprep.subr.mxu0 0.0
    %627 = vmatpush1.msra.mxu0 %v75
    %628 = vmatprep.subr.mxu0 0.0
    %629 = vmatpush1.msra.mxu0 %v76
    %630 = vmatprep.subr.mxu0 0.0
    %631 = vmatpush1.msra.mxu0 %v77
    %632 = vmatprep.subr.mxu0 0.0
    %633 = vmatpush1.msra.mxu0 0.0
    %634 = vmatprep.subr.mxu0 0.0
    %635 = vmatpush1.msra.mxu0 0.0
    %636 = vmatprep.subr.mxu0 0.0
    %637 = vmatpush1.msra.mxu0 0.0
    %638 = vmatprep.subr.mxu0 0.0
    %639 = vmatpush1.msra.mxu0 0.0
    %640 = vmatprep.subr.mxu0 0.0
    %641 = vmatpush1.msra.mxu0 0.0
    %642 = vmatprep.subr.mxu0 0.0
    %643 = vmatpush1.msra.mxu0 0.0
    %644 = vmatprep.subr.mxu0 0.0
    %645 = vmatpush1.msra.mxu0 0.0
    %646 = vmatprep.subr.mxu0 0.0
    %647 = vmatpush1.msra.mxu0 0.0
    %648 = vmatprep.subr.mxu0 0.0
    %649 = vmatpush1.msra.mxu0 0.0
    %650 = vmatprep.subr.mxu0 0.0
    %651 = vmatpush1.msra.mxu0 0.0
    %652 = vmatprep.subr.mxu0 0.0
    %653 = vmatpush1.msra.mxu0 0.0
    %654 = vmatprep.subr.mxu0 0.0
    %655 = vmatpush1.msra.mxu0 0.0
    %656 = vmatprep.subr.mxu0 0.0
    %657 = vmatpush1.msra.mxu0 0.0
    %658 = vmatprep.subr.mxu0 0.0
    %659 = vmatpush1.msra.mxu0 0.0
    %660 = vmatprep.subr.mxu0 0.0
    %661 = vmatpush1.msra.mxu0 0.0
    %662 = vmatprep.subr.mxu0 0.0
    %663 = vmatpush1.msra.mxu0 0.0
    %664 = vmatprep.mubr.f32.mxu0 0.0
    %665 = vmatmul.mubr.f32.gmra.mrb[0].mxu0 %v584
    %v666 = vpop.f32.mrb[0].mxu0
    %v667 = vadd.f32 0.0, %v666
    %v668 = vpop.f32.mrb[0].mxu0
    %669 = vmatprep.mubr.f32.mxu0 0.0
    %670 = vmatmul.mubr.f32.gmra.mrb[0].mxu0 %v585
    %v671 = vpop.f32.mrb[0].mxu0
    %v672 = vadd.f32 0.0, %v671
    %v673 = vpop.f32.mrb[0].mxu0
    %674 = vmatprep.mubr.f32.mxu0 0.0
    %675 = vmatmul.mubr.f32.gmra.mrb[0].mxu0 %v586
    %v676 = vpop.f32.mrb[0].mxu0
    %v677 = vadd.f32 0.0, %v676
    %v678 = vpop.f32.mrb[0].mxu0
    %679 = vmatprep.mubr.f32.mxu0 0.0
    %680 = vmatmul.mubr.f32.gmra.mrb[0].mxu0 %v587
    %v681 = vpop.f32.mrb[0].mxu0
    %v682 = vadd.f32 0.0, %v681
    %v683 = vpop.f32.mrb[0].mxu0
    %684 = vmatprep.mubr.f32.mxu0 0.0
    %685 = vmatmul.mubr.f32.gmra.mrb[0].mxu0 %v588
    %v686 = vpop.f32.mrb[0].mxu0
    %v687 = vadd.f32 0.0, %v686
    %v688 = vpop.f32.mrb[0].mxu0
    %689 = vmatprep.mubr.f32.mxu0 0.0
    %690 = vmatmul.mubr.f32.gmra.mrb[0].mxu0 %v589
    %v691 = vpop.f32.mrb[0].mxu0
    %v692 = vadd.f32 0.0, %v691
    %v693 = vpop.f32.mrb[0].mxu0
    %694 = vmatprep.mubr.f32.mxu0 0.0
    %695 = vmatmul.mubr.f32.gmra.mrb[0].mxu0 %v590
    %v696 = vpop.f32.mrb[0].mxu0
    %v697 = vadd.f32 0.0, %v696
    %v698 = vpop.f32.mrb[0].mxu0
    %699 = vmatprep.mubr.f32.mxu0 0.0
    %700 = vmatmul.mubr.f32.gmra.mrb[0].mxu0 %v591
    %v701 = vpop.f32.mrb[0].mxu0
    %v702 = vadd.f32 0.0, %v701
    %v703 = vpop.f32.mrb[0].mxu0
    %704 = vmatprep.mubr.f32.mxu0 0.0
    %705 = vmatmul.mubr.f32.gmra.mrb[0].mxu0 %v592
    %v706 = vpop.f32.mrb[0].mxu0
    %v707 = vadd.f32 0.0, %v706
    %v708 = vpop.f32.mrb[0].mxu0
    %709 = vmatprep.mubr.f32.mxu0 0.0
    %710 = vmatmul.mubr.f32.gmra.mrb[0].mxu0 %v593
    %v711 = vpop.f32.mrb[0].mxu0
    %v712 = vadd.f32 0.0, %v711
    %v713 = vpop.f32.mrb[0].mxu0
    %714 = vmatprep.mubr.f32.mxu0 0.0
    %715 = vmatmul.mubr.f32.gmra.mrb[0].mxu0 %v594
    %v716 = vpop.f32.mrb[0].mxu0
    %v717 = vadd.f32 0.0, %v716
    %v718 = vpop.f32.mrb[0].mxu0
    %719 = vmatprep.mubr.f32.mxu0 0.0
    %720 = vmatmul.mubr.f32.gmra.mrb[0].mxu0 %v595
    %v721 = vpop.f32.mrb[0].mxu0
    %v722 = vadd.f32 0.0, %v721
    %v723 = vpop.f32.mrb[0].mxu0
    %724 = vmatprep.mubr.f32.mxu0 0.0
    %725 = vmatmul.mubr.f32.gmra.mrb[0].mxu0 %v596
    %v726 = vpop.f32.mrb[0].mxu0
    %v727 = vadd.f32 0.0, %v726
    %v728 = vpop.f32.mrb[0].mxu0
    %729 = vmatprep.mubr.f32.mxu0 0.0
    %730 = vmatmul.mubr.f32.gmra.mrb[0].mxu0 %v597
    %v731 = vpop.f32.mrb[0].mxu0
    %v732 = vadd.f32 0.0, %v731
    %v733 = vpop.f32.mrb[0].mxu0
    %734 = vmatprep.mubr.f32.mxu0 0.0
    %735 = vmatmul.mubr.f32.gmra.mrb[0].mxu0 %v598
    %v736 = vpop.f32.mrb[0].mxu0
    %v737 = vadd.f32 0.0, %v736
    %v738 = vpop.f32.mrb[0].mxu0
    %739 = vmatprep.mubr.f32.mxu0 0.0
    %740 = vmatmul.mubr.f32.gmra.mrb[0].mxu0 %v599
    %v741 = vpop.f32.mrb[0].mxu0
    %v742 = vadd.f32 0.0, %v741
    %v743 = vpop.f32.mrb[0].mxu0
    %744 = vdwg.mxu0
    %745 = vst [vmem:[#allocation7] sm:$0xff] %v667
    %746 = vst [vmem:[#allocation7 + $0x8] sm:$0xff] %v672
    %747 = vst [vmem:[#allocation7 + $0x10] sm:$0xff] %v677
    %748 = vst [vmem:[#allocation7 + $0x18] sm:$0xff] %v682
    %749 = vst [vmem:[#allocation7 + $0x20] sm:$0xff] %v687
    %750 = vst [vmem:[#allocation7 + $0x28] sm:$0xff] %v692
    %751 = vst [vmem:[#allocation7 + $0x30] sm:$0xff] %v697
    %752 = vst [vmem:[#allocation7 + $0x38] sm:$0xff] %v702
    %753 = vst [vmem:[#allocation7 + $0x40] sm:$0xff] %v707
    %754 = vst [vmem:[#allocation7 + $0x48] sm:$0xff] %v712
    %755 = vst [vmem:[#allocation7 + $0x50] sm:$0xff] %v717
    %756 = vst [vmem:[#allocation7 + $0x58] sm:$0xff] %v722
    %757 = vst [vmem:[#allocation7 + $0x60] sm:$0xff] %v727
    %758 = vst [vmem:[#allocation7 + $0x68] sm:$0xff] %v732
    %759 = vst [vmem:[#allocation7 + $0x70] sm:$0xff] %v737
    %760 = vst [vmem:[#allocation7 + $0x78] sm:$0xff] %v742
    %v761 = vlaneseq
    %v762 = vshrl.u32 %v761, 7
    %v763 = vadd.s32 %v762, 8
    %v764 = vadd.s32 %v762, 16
    %v765 = vadd.s32 %v762, 24
    %v766 = vadd.s32 %v762, 32
    %v767 = vadd.s32 %v762, 40
    %v768 = vadd.s32 %v762, 48
    %v769 = vadd.s32 %v762, 56
    %v770 = vadd.s32 %v762, 64
    %v771 = vadd.s32 %v762, 72
    %v772 = vadd.s32 %v762, 80
    %v773 = vadd.s32 %v762, 88
    %v774 = vadd.s32 %v762, 96
    %v775 = vadd.s32 %v762, 104
    %v776 = vadd.s32 %v762, 112
    %v777 = vadd.s32 %v762, 120
    %s778 = smul.u32 0, 128
    %v779 = vstv %s778
    %v780 = vadd.s32 %v762, %v779
    %v781 = vadd.s32 %v763, %v779
    %v782 = vadd.s32 %v764, %v779
    %v783 = vadd.s32 %v765, %v779
    %v784 = vadd.s32 %v766, %v779
    %v785 = vadd.s32 %v767, %v779
    %v786 = vadd.s32 %v768, %v779
    %v787 = vadd.s32 %v769, %v779
    %v788 = vadd.s32 %v770, %v779
    %v789 = vadd.s32 %v771, %v779
    %v790 = vadd.s32 %v772, %v779
    %v791 = vadd.s32 %v773, %v779
    %v792 = vadd.s32 %v774, %v779
    %v793 = vadd.s32 %v775, %v779
    %v794 = vadd.s32 %v776, %v779
    %v795 = vadd.s32 %v777, %v779
    %vm796 = vcmp.lt.s32.totalorder %v780, 128
    %vm797 = vcmp.lt.s32.totalorder %v781, 128
    %vm798 = vcmp.lt.s32.totalorder %v782, 128
    %vm799 = vcmp.lt.s32.totalorder %v783, 128
    %vm800 = vcmp.lt.s32.totalorder %v784, 128
    %vm801 = vcmp.lt.s32.totalorder %v785, 128
    %vm802 = vcmp.lt.s32.totalorder %v786, 128
    %vm803 = vcmp.lt.s32.totalorder %v787, 128
    %vm804 = vcmp.lt.s32.totalorder %v788, 128
    %vm805 = vcmp.lt.s32.totalorder %v789, 128
    %vm806 = vcmp.lt.s32.totalorder %v790, 128
    %vm807 = vcmp.lt.s32.totalorder %v791, 128
    %vm808 = vcmp.lt.s32.totalorder %v792, 128
    %vm809 = vcmp.lt.s32.totalorder %v793, 128
    %vm810 = vcmp.lt.s32.totalorder %v794, 128
    %vm811 = vcmp.lt.s32.totalorder %v795, 128
    %v812 = vsel %vm796, 1, 0
    %v813 = vsel %vm797, 1, 0
    %v814 = vsel %vm798, 1, 0
    %v815 = vsel %vm799, 1, 0
    %v816 = vsel %vm800, 1, 0
    %v817 = vsel %vm801, 1, 0
    %v818 = vsel %vm802, 1, 0
    %v819 = vsel %vm803, 1, 0
    %v820 = vsel %vm804, 1, 0
    %v821 = vsel %vm805, 1, 0
    %v822 = vsel %vm806, 1, 0
    %v823 = vsel %vm807, 1, 0
    %v824 = vsel %vm808, 1, 0
    %v825 = vsel %vm809, 1, 0
    %v826 = vsel %vm810, 1, 0
    %v827 = vsel %vm811, 1, 0
    %v828 = vcvt.s32.f32 %v812
    %v829 = vcvt.s32.f32 %v813
    %v830 = vcvt.s32.f32 %v814
    %v831 = vcvt.s32.f32 %v815
    %v832 = vcvt.s32.f32 %v816
    %v833 = vcvt.s32.f32 %v817
    %v834 = vcvt.s32.f32 %v818
    %v835 = vcvt.s32.f32 %v819
    %v836 = vcvt.s32.f32 %v820
    %v837 = vcvt.s32.f32 %v821
    %v838 = vcvt.s32.f32 %v822
    %v839 = vcvt.s32.f32 %v823
    %v840 = vcvt.s32.f32 %v824
    %v841 = vcvt.s32.f32 %v825
    %v842 = vcvt.s32.f32 %v826
    %v843 = vcvt.s32.f32 %v827
    %v844 = vsub.f32 %v667, %v46
    %v845 = vsub.f32 %v672, %v47
    %v846 = vsub.f32 %v677, %v48
    %v847 = vsub.f32 %v682, %v49
    %v848 = vsub.f32 %v687, %v50
    %v849 = vsub.f32 %v692, %v51
    %v850 = vsub.f32 %v697, %v52
    %v851 = vsub.f32 %v702, %v53
    %v852 = vsub.f32 %v707, %v54
    %v853 = vsub.f32 %v712, %v55
    %v854 = vsub.f32 %v717, %v56
    %v855 = vsub.f32 %v722, %v57
    %v856 = vsub.f32 %v727, %v58
    %v857 = vsub.f32 %v732, %v59
    %v858 = vsub.f32 %v737, %v60
    %v859 = vsub.f32 %v742, %v61
    %v860 = vmul.f32 %v844, %v828
    %v861 = vmul.f32 %v845, %v829
    %v862 = vmul.f32 %v846, %v830
    %v863 = vmul.f32 %v847, %v831
    %v864 = vmul.f32 %v848, %v832
    %v865 = vmul.f32 %v849, %v833
    %v866 = vmul.f32 %v850, %v834
    %v867 = vmul.f32 %v851, %v835
    %v868 = vmul.f32 %v852, %v836
    %v869 = vmul.f32 %v853, %v837
    %v870 = vmul.f32 %v854, %v838
    %v871 = vmul.f32 %v855, %v839
    %v872 = vmul.f32 %v856, %v840
    %v873 = vmul.f32 %v857, %v841
    %v874 = vmul.f32 %v858, %v842
    %v875 = vmul.f32 %v859, %v843
    %v876 = vmul.f32 %v860, %v860
    %v877 = vmul.f32 %v861, %v861
    %v878 = vmul.f32 %v862, %v862
    %v879 = vmul.f32 %v863, %v863
    %v880 = vmul.f32 %v864, %v864
    %v881 = vmul.f32 %v865, %v865
    %v882 = vmul.f32 %v866, %v866
    %v883 = vmul.f32 %v867, %v867
    %v884 = vmul.f32 %v868, %v868
    %v885 = vmul.f32 %v869, %v869
    %v886 = vmul.f32 %v870, %v870
    %v887 = vmul.f32 %v871, %v871
    %v888 = vmul.f32 %v872, %v872
    %v889 = vmul.f32 %v873, %v873
    %v890 = vmul.f32 %v874, %v874
    %v891 = vmul.f32 %v875, %v875
    %v892 = vadd.f32 %v876, %v877
    %v893 = vadd.f32 %v892, %v878
    %v894 = vadd.f32 %v893, %v879
    %v895 = vadd.f32 %v894, %v880
    %v896 = vadd.f32 %v895, %v881
    %v897 = vadd.f32 %v896, %v882
    %v898 = vadd.f32 %v897, %v883
    %v899 = vadd.f32 %v898, %v884
    %v900 = vadd.f32 %v899, %v885
    %v901 = vadd.f32 %v900, %v886
    %v902 = vadd.f32 %v901, %v887
    %v903 = vadd.f32 %v902, %v888
    %v904 = vadd.f32 %v903, %v889
    %v905 = vadd.f32 %v904, %v890
    %v906 = vadd.f32 %v905, %v891
    %v907 = vrot.slane %v906, 4
    %v908 = vadd.f32 %v906, %v907
    %v909 = vrot.slane %v908, 2
    %v910 = vadd.f32 %v908, %v909
    %v911 = vrot.slane %v910, 1
    %v912 = vadd.f32 %v910, %v911
    %913 = vst [vmem:[#allocation8] sm:$0x1] %v912
    // Predicated region
    $region22: #{tpu_custom_call.1} parent=1 // pred_check
      _
    $region23: #{tpu_custom_call.1} parent=1 // pred_check_branch
      %915 = sbr.rel (0) target = $region25
    $region24: #{tpu_custom_call.1} parent=1 // pred_region
      %s917 = ssub.s32 2048, 2048
      %918 = vsyncadd [#allocation4], %s917
      %s919 = sshll.u32 [#allocation7], 4
      %s920 = int_to_ptr.vmem [resolvable:$true] %s919
      %925 = dma.vmem_to_hbm [thread:$0]  %s920, 2048, %s3, [#allocation4], 128, 128, 8
    $region25: #{tpu_custom_call.1} parent=1 // pred_fallthru
      _
    // Predicated region
    $region26: #{tpu_custom_call.1} parent=1 // pred_check
      _
    $region27: #{tpu_custom_call.1} parent=1 // pred_check_branch
      %927 = sbr.rel (0) target = $region29
    $region28: #{tpu_custom_call.1} parent=1 // pred_region
      %s929 = ssub.s32 16, 16
      %930 = vsyncadd [#allocation9], %s929
      %s932 = sshll.u32 [#allocation8], 4
      %s933 = int_to_ptr.vmem [resolvable:$true] %s932
      %935 = dma.vmem_to_hbm [thread:$0]  %s933, 16, %s4, [#allocation9]
    $region29: #{tpu_custom_call.1} parent=1 // pred_fallthru
      _
    // Predicated region
    $region30: #{tpu_custom_call.1} parent=1 // pred_check
      _
    $region31: #{tpu_custom_call.1} parent=1 // pred_check_branch
      %937 = sbr.rel (0) target = $region33
    $region32: #{tpu_custom_call.1} parent=1 // pred_region
      %938 = dma.done [#allocation4], 2048
    $region33: #{tpu_custom_call.1} parent=1 // pred_fallthru
      _
    // Predicated region
    $region34: #{tpu_custom_call.1} parent=1 // pred_check
      _
    $region35: #{tpu_custom_call.1} parent=1 // pred_check_branch
      %940 = sbr.rel (0) target = $region37
    $region36: #{tpu_custom_call.1} parent=1 // pred_region
      %941 = dma.done [#allocation9], 16
    $region37: #{tpu_custom_call.1} parent=1 // pred_fallthru
      _
    %942 = vsyncpa [#allocation3], 1
    %943 = vsyncpa [#allocation6], 1
    %944 = vsyncpa [#allocation4], 1
    %945 = vsyncpa [#allocation9], 1

</llo_original>
